<compile_context>
chip_gen: v7x
topology: tpu7x:2x2x1
jax: 0.10.0
libtpu: 0.0.40
codegen_flags: <defaults>
</compile_context>

<pallas_src>
import functools

import jax
import jax.numpy as jnp
from jax.experimental import pallas as pl
from jax.experimental.pallas import tpu as pltpu


def _round_up(x, m):
    return ((x + m - 1) // m) * m


def _choose_batch_tiling(B, tb_target):
    """Return (TB, B_pad).  Prefer tiles that divide B exactly (no padding copy of x)
    and >= 2 tiles for large batches (keeps both v7x TensorCores busy)."""
    start = (min(tb_target, B) // 8) * 8
    for c in range(start, 7, -8):
        if B % c == 0 and not (B >= 256 and B // c < 2):
            return c, B
    if B <= tb_target:
        return B, B                      # single full-batch tile (block dim == array dim)
    # Rare: large batch with no multiple-of-8 divisor -> pad batch rows only.
    TB = min(tb_target, 512)
    return TB, _round_up(B, TB)


def _choose_feature_tiling(D, td_target):
    """Return (TD, nk).  One full-D step when D fits the target or is not lane-aligned;
    otherwise the largest multiple-of-128 divisor of D <= td_target (no x padding)."""
    if D <= td_target or D % 128 != 0:
        # NOTE: assumes a full-D row tile fits VMEM when D is not 128-aligned
        # (true for typical flattened CNN feature sizes).
        return D, 1
    td = 128
    for cand in range((td_target // 128) * 128, 127, -128):
        if D % cand == 0:
            td = cand
            break
    return td, D // td


def _deepfake_kernel(x_ref, w_ref, b_ref, o_ref, *, td, nk, w_resident):
    # x_ref : (TB, TD)      f32 flattened-input tile (cast to bf16 in-kernel)
    # w_ref : (D, NC_PAD)   bf16 weights, VMEM-resident   (or (TD, NC_PAD) per-k tile)
    # b_ref : (1, NC_PAD)   f32 bias (padded classes = -1e30)
    # o_ref : (TB, NC_PAD)  f32; doubles as the logits accumulator (resident across k)
    k = pl.program_id(1)

    x = x_ref[...].astype(jnp.bfloat16)
    if w_resident and nk > 1:
        w = w_ref[pl.ds(pl.multiple_of(k * td, 128), td), :]
    else:
        w = w_ref[...]
    part = jnp.dot(x, w, preferred_element_type=jnp.float32)

    @pl.when(k == 0)
    def _first():
        o_ref[...] = part

    @pl.when(k > 0)
    def _accumulate():
        o_ref[...] += part

    @pl.when(k == nk - 1)
    def _finalize():
        # Bias once, on the fully accumulated logits; softmax entirely in f32.
        logits = o_ref[...] + b_ref[...]
        m = jnp.max(logits, axis=-1, keepdims=True)
        e = jnp.exp(logits - m)                  # padded classes -> exp(-1e30 - m) == 0
        denom = jnp.sum(e, axis=-1, keepdims=True)
        o_ref[...] = e * pl.reciprocal(denom, approx=True)


def deepfake_forward(x_nchw, w, b, *, tb_target=1024, td_target=2048):
    """x_nchw: (B, C, H, W) f32; w: (D, num_classes) f32; b: (num_classes,) f32."""
    B = x_nchw.shape[0]
    D, NC = w.shape
    NC_PAD = _round_up(NC, 128)          # lane-dense output / MXU N (do NOT pad to 256)

    TB, B_pad = _choose_batch_tiling(B, tb_target)
    TD, nk = _choose_feature_tiling(D, td_target)
    nb = B_pad // TB

    # x goes in as raw f32 -- no host-side bf16/padding pass over the big tensor.
    x_flat = x_nchw.reshape(B, -1)       # matches torch .view(B, -1) (row-major NCHW)
    if B_pad != B:
        x_flat = jnp.pad(x_flat, ((0, B_pad - B), (0, 0)))

    # Only the (tiny) weights / bias get padded, to the 128-lane class dimension.
    w_p = jnp.zeros((D, NC_PAD), jnp.bfloat16).at[:, :NC].set(w.astype(jnp.bfloat16))
    b_p = jnp.full((1, NC_PAD), -1e30, jnp.float32).at[0, :NC].set(b.astype(jnp.float32))

    # Keep the whole weight matrix resident in VMEM (DMA'd once for the whole grid)
    # whenever it is small; otherwise fall back to per-k weight tiles.
    w_resident = D * NC_PAD * 2 <= 8 * 1024 * 1024
    if w_resident:
        w_spec = pl.BlockSpec((D, NC_PAD), lambda i, k: (0, 0))
    else:
        w_spec = pl.BlockSpec((TD, NC_PAD), lambda i, k: (k, 0))

    kernel = functools.partial(_deepfake_kernel, td=TD, nk=nk, w_resident=w_resident)

    # VMEM: double-buffered f32 x tiles + resident w + double-buffered f32 out + bias.
    vmem_est = (2 * TB * TD * 4
                + (D * NC_PAD * 2 if w_resident else 2 * TD * NC_PAD * 2)
                + 2 * TB * NC_PAD * 4
                + NC_PAD * 4)
    vmem_limit = min(max(2 * vmem_est, 16 * 1024 * 1024), 48 * 1024 * 1024)

    cost = pl.CostEstimate(
        flops=2 * B_pad * D * NC_PAD,
        transcendentals=B_pad * NC_PAD,
        bytes_accessed=(B_pad * D * 4 + D * NC_PAD * 2
                        + NC_PAD * 4 + B_pad * NC_PAD * 4),
    )

    out = pl.pallas_call(
        kernel,
        out_shape=jax.ShapeDtypeStruct((B_pad, NC_PAD), jnp.float32),
        grid=(nb, nk),                                        # reduction (K) axis last
        in_specs=[
            pl.BlockSpec((TB, TD), lambda i, k: (i, k)),      # f32 x tile
            w_spec,                                           # bf16 weights
            pl.BlockSpec((1, NC_PAD), lambda i, k: (0, 0)),   # bias (resident)
        ],
        out_specs=pl.BlockSpec((TB, NC_PAD), lambda i, k: (i, 0)),
        compiler_params=pltpu.CompilerParams(
            dimension_semantics=("parallel", "arbitrary"),
            vmem_limit_bytes=vmem_limit,
        ),
        cost_estimate=cost,
    )(x_flat, w_p, b_p)

    return out[:B, :NC]


def reference_forward(x_nchw, w, b):
    # Same numerics as the kernel: bf16 matmul inputs, f32 accumulation + f32 softmax.
    x_flat = x_nchw.reshape(x_nchw.shape[0], -1)
    logits = jnp.dot(x_flat.astype(jnp.bfloat16), w.astype(jnp.bfloat16),
                     preferred_element_type=jnp.float32) + b.astype(jnp.float32)
    return jax.nn.softmax(logits, axis=-1)


if __name__ == "__main__":
    key = jax.random.PRNGKey(0)
    k_x, k_w, k_b = jax.random.split(key, 3)

    B, C, H, W = 2, 4, 16, 16          # small NCHW input
    NUM_CLASSES = 2                    # real vs. fake
    D = C * H * W

    x = jax.random.normal(k_x, (B, C, H, W), dtype=jnp.float32)
    w = jax.random.normal(k_w, (D, NUM_CLASSES), dtype=jnp.float32) * 0.02
    b = jax.random.normal(k_b, (NUM_CLASSES,), dtype=jnp.float32) * 0.01

    out = jax.block_until_ready(deepfake_forward(x, w, b))
    ref = reference_forward(x, w, b)

    assert out.shape == (B, NUM_CLASSES)
    # Tolerances account for bf16 matmul inputs + approx (EUP) reciprocal.
    assert jnp.allclose(out, ref, atol=3e-3, rtol=3e-3), "mismatch vs reference"
    assert jnp.allclose(jnp.sum(out, axis=-1), 1.0, atol=3e-3), "rows must sum to 1"

    print("KERNEL_OK")
</pallas_src>

<mosaic_0001>
module attributes {stable_mosaic.version = 11 : i64} {
  func.func @_deepfake_kernel(%arg0: i32, %arg1: i32, %arg2: memref<2x1024xf32, #tpu.memory_space<vmem>>, %arg3: memref<1024x128xbf16, #tpu.memory_space<vmem>>, %arg4: memref<1x128xf32, #tpu.memory_space<vmem>>, %arg5: memref<2x128xf32, #tpu.memory_space<vmem>>) attributes {dimension_semantics = [#tpu.dimension_semantics<parallel>, #tpu.dimension_semantics<arbitrary>], iteration_bounds = array<i64: 1, 1>, scalar_prefetch = 0 : i64, scratch_operands = 0 : i64, tpu.core_type = #tpu.core_type<tc>, window_params = [{transform_indices = @transform_0, window_bounds = array<i64: 2, 1024>}, {pipeline_mode = #tpu.pipeline_mode<synchronous>, transform_indices = @transform_1, window_bounds = array<i64: 1024, 128>}, {pipeline_mode = #tpu.pipeline_mode<synchronous>, transform_indices = @transform_2, window_bounds = array<i64: 1, 128>}, {transform_indices = @transform_3, window_bounds = array<i64: 2, 128>}]} {
    %c0 = arith.constant 0 : index
    %c0_0 = arith.constant 0 : index
    %0 = vector.load %arg2[%c0, %c0_0] : memref<2x1024xf32, #tpu.memory_space<vmem>>, vector<2x1024xf32>
    %1 = arith.truncf %0 : vector<2x1024xf32> to vector<2x1024xbf16>
    %c0_1 = arith.constant 0 : index
    %c0_2 = arith.constant 0 : index
    %2 = vector.load %arg3[%c0_1, %c0_2] : memref<1024x128xbf16, #tpu.memory_space<vmem>>, vector<1024x128xbf16>
    %cst = arith.constant dense<0.000000e+00> : vector<2x128xf32>
    %3 = tpu.matmul %1, %2, %cst {dimension_numbers = #tpu.dot_dimension_numbers<[1], [0], [0], [1], [0, 0, 1, 1], [], []>} : vector<2x1024xbf16>, vector<1024x128xbf16>, vector<2x128xf32> -> vector<2x128xf32>
    %c0_i32 = arith.constant 0 : i32
    %4 = arith.cmpi eq, %arg1, %c0_i32 : i32
    %5 = arith.extui %4 : i1 to i32
    %c0_i32_3 = arith.constant 0 : i32
    %6 = arith.cmpi ne, %5, %c0_i32_3 : i32
    scf.if %6 {
      %c0_8 = arith.constant 0 : index
      %c0_9 = arith.constant 0 : index
      %13 = vector.load %arg5[%c0_8, %c0_9] : memref<2x128xf32, #tpu.memory_space<vmem>>, vector<2x128xf32>
      tpu.vector_store %arg5[%c0_8, %c0_9], %3 {strides = array<i32>} : memref<2x128xf32, #tpu.memory_space<vmem>>, vector<2x128xf32>,
    } else {
    }
    %c0_i32_4 = arith.constant 0 : i32
    %7 = arith.cmpi sgt, %arg1, %c0_i32_4 : i32
    %8 = arith.extui %7 : i1 to i32
    %c0_i32_5 = arith.constant 0 : i32
    %9 = arith.cmpi ne, %8, %c0_i32_5 : i32
    scf.if %9 {
      %c0_8 = arith.constant 0 : index
      %c0_9 = arith.constant 0 : index
      %13 = vector.load %arg5[%c0_8, %c0_9] : memref<2x128xf32, #tpu.memory_space<vmem>>, vector<2x128xf32>
      %14 = arith.addf %13, %3 : vector<2x128xf32>
      %c0_10 = arith.constant 0 : index
      %c0_11 = arith.constant 0 : index
      %15 = vector.load %arg5[%c0_10, %c0_11] : memref<2x128xf32, #tpu.memory_space<vmem>>, vector<2x128xf32>
      tpu.vector_store %arg5[%c0_10, %c0_11], %14 {strides = array<i32>} : memref<2x128xf32, #tpu.memory_space<vmem>>, vector<2x128xf32>,
    } else {
    }
    %c0_i32_6 = arith.constant 0 : i32
    %10 = arith.cmpi eq, %arg1, %c0_i32_6 : i32
    %11 = arith.extui %10 : i1 to i32
    %c0_i32_7 = arith.constant 0 : i32
    %12 = arith.cmpi ne, %11, %c0_i32_7 : i32
    scf.if %12 {
      %c0_8 = arith.constant 0 : index
      %c0_9 = arith.constant 0 : index
      %13 = vector.load %arg5[%c0_8, %c0_9] : memref<2x128xf32, #tpu.memory_space<vmem>>, vector<2x128xf32>
      %c0_10 = arith.constant 0 : index
      %c0_11 = arith.constant 0 : index
      %14 = vector.load %arg4[%c0_10, %c0_11] : memref<1x128xf32, #tpu.memory_space<vmem>>, vector<1x128xf32>
      %15 = vector.broadcast %14 : vector<1x128xf32> to vector<2x128xf32>
      %16 = arith.addf %13, %15 : vector<2x128xf32>
      %cst_12 = arith.constant dense<0xFF800000> : vector<2xf32>
      %17 = vector.multi_reduction <maximumf>, %16, %cst_12 [1] : vector<2x128xf32> to vector<2xf32>
      %18 = vector.shape_cast %17 : vector<2xf32> to vector<2x1xf32>
      %19 = vector.broadcast %18 : vector<2x1xf32> to vector<2x128xf32>
      %20 = arith.subf %16, %19 : vector<2x128xf32>
      %21 = math.exp %20 : vector<2x128xf32>
      %cst_13 = arith.constant dense<0.000000e+00> : vector<2xf32>
      %22 = vector.multi_reduction <add>, %21, %cst_13 [1] : vector<2x128xf32> to vector<2xf32>
      %23 = vector.shape_cast %22 : vector<2xf32> to vector<2x1xf32>
      %24 = tpu.reciprocal %23 {approx = true} : vector<2x1xf32> -> vector<2x1xf32>
      %25 = vector.broadcast %24 : vector<2x1xf32> to vector<2x128xf32>
      %26 = arith.mulf %21, %25 : vector<2x128xf32>
      %c0_14 = arith.constant 0 : index
      %c0_15 = arith.constant 0 : index
      %27 = vector.load %arg5[%c0_14, %c0_15] : memref<2x128xf32, #tpu.memory_space<vmem>>, vector<2x128xf32>
      tpu.vector_store %arg5[%c0_14, %c0_15], %26 {strides = array<i32>} : memref<2x128xf32, #tpu.memory_space<vmem>>, vector<2x128xf32>,
    } else {
    }
    return
  }
  func.func @transform_0(%arg0: i32, %arg1: i32) -> (i32, i32) {
    %c0_i32 = arith.constant 0 : i32
    return %arg0, %arg1 : i32, i32
  }
  func.func @transform_1(%arg0: i32, %arg1: i32) -> (i32, i32) {
    %c0_i32 = arith.constant 0 : i32
    %c0_i32_0 = arith.constant 0 : i32
    %c0_i32_1 = arith.constant 0 : i32
    return %c0_i32, %c0_i32_0 : i32, i32
  }
  func.func @transform_2(%arg0: i32, %arg1: i32) -> (i32, i32) {
    %c0_i32 = arith.constant 0 : i32
    %c0_i32_0 = arith.constant 0 : i32
    %c0_i32_1 = arith.constant 0 : i32
    return %c0_i32, %c0_i32_0 : i32, i32
  }
  func.func @transform_3(%arg0: i32, %arg1: i32) -> (i32, i32) {
    %c0_i32 = arith.constant 0 : i32
    %c0_i32_0 = arith.constant 0 : i32
    return %arg0, %c0_i32 : i32, i32
  }
}

</mosaic_0001>

<llo_original>
// kernel: tpu_custom_call.1
$region0: #{tpu_custom_call.1}
  #allocation0 [shape = 'u32[]', space=smem, size = 0x4, offset = 0x4, fixed_abs, tag = 'smem constant byte address 0x4 - core index']
  #allocation1 [shape = 'u32[144,128]{1,0:T(1,128)}', space=vmem, size = 0x12000, scoped, tag = 'internal scratch']
  %s0 = inlined_call_operand.hbm [shape: f32[2,1024], index: 0, kind: input, shape index: {}]
  %s1 = inlined_call_operand.hbm [shape: bf16[1024,128], index: 1, kind: input, shape index: {}]
  %s2 = inlined_call_operand.vmem [shape: f32[1,128], index: 2, kind: input, shape index: {}]
  %s3 = inlined_call_operand.hbm [shape: f32[2,128], index: 3, kind: output, shape index: {}]
  %s4 = sld [smem:[#allocation0]]
  $region42: #{tpu_custom_call.1} parent=0
    _
  %s6 = ssub.s32 1, %s4
  %s7 = scalar_select 0, %s6, %s4
  $region1: #{tpu_custom_call.1} parent=0
    #allocation2 [shape = 'u8[8192]{0}', space=vmem, size = 0x2000, scoped, tag = 'input window, operand 0, single buffered']
    #allocation3 [shape = 's32[1]{0}', space=sflag, size = 0x4, scoped, tag = 'scoped memory for tpu_custom_call.1']
    #allocation4 [shape = 's32[1]{0}', space=sflag, size = 0x4, scoped, tag = 'scoped memory for tpu_custom_call.1']
    #allocation5 [shape = 'u8[262144]{0}', space=vmem, size = 0x40000, scoped, tag = 'input window, operand 1, single buffered']
    #allocation6 [shape = 's32[1]{0}', space=sflag, size = 0x4, scoped, tag = 'scoped memory for tpu_custom_call.1']
    #allocation7 [shape = 'u8[1024]{0}', space=vmem, size = 0x400, scoped, tag = 'output window, operand 0, single buffered']
    %8 = vsyncpa [#allocation3], 0
    %9 = vsyncpa [#allocation6], 0
    %10 = vsyncpa [#allocation4], 0
    // Predicated region
    $region2: #{tpu_custom_call.1} parent=1 // pred_check
      _
    $region3: #{tpu_custom_call.1} parent=1 // pred_check_branch
      %12 = sbr.rel (0) target = $region5
    $region4: #{tpu_custom_call.1} parent=1 // pred_region
      %s14 = ssub.s32 256, 256
      %15 = vsyncadd [#allocation3], %s14
      %s17 = sshll.u32 [#allocation2], 4
      %s18 = int_to_ptr.vmem [resolvable:$true] %s17
      %20 = dma.hbm_to_vmem [thread:$0]  %s0, 256, %s18, [#allocation3]
    $region5: #{tpu_custom_call.1} parent=1 // pred_fallthru
      _
    // Predicated region
    $region6: #{tpu_custom_call.1} parent=1 // pred_check
      _
    $region7: #{tpu_custom_call.1} parent=1 // pred_check_branch
      %22 = sbr.rel (0) target = $region9
    $region8: #{tpu_custom_call.1} parent=1 // pred_region
      %s24 = ssub.s32 8192, 8192
      %25 = vsyncadd [#allocation6], %s24
      %s26 = sshll.u32 [#allocation5], 4
      %s27 = int_to_ptr.vmem [resolvable:$true] %s26
      %32 = dma.hbm_to_vmem [thread:$0]  %s1, 8192, %s27, [#allocation6], 64, 64, 4
    $region9: #{tpu_custom_call.1} parent=1 // pred_fallthru
      _
    // Predicated region
    $region10: #{tpu_custom_call.1} parent=1 // pred_check
      _
    $region11: #{tpu_custom_call.1} parent=1 // pred_check_branch
      %34 = sbr.rel (0) target = $region13
    $region12: #{tpu_custom_call.1} parent=1 // pred_region
      _
    $region13: #{tpu_custom_call.1} parent=1 // pred_fallthru
      _
    // Predicated region
    $region14: #{tpu_custom_call.1} parent=1 // pred_check
      _
    $region15: #{tpu_custom_call.1} parent=1 // pred_check_branch
      %36 = sbr.rel (0) target = $region17
    $region16: #{tpu_custom_call.1} parent=1 // pred_region
      %37 = dma.done [#allocation3], 256
    $region17: #{tpu_custom_call.1} parent=1 // pred_fallthru
      _
    // Predicated region
    $region18: #{tpu_custom_call.1} parent=1 // pred_check
      _
    $region19: #{tpu_custom_call.1} parent=1 // pred_check_branch
      %39 = sbr.rel (0) target = $region21
    $region20: #{tpu_custom_call.1} parent=1 // pred_region
      %40 = dma.done [#allocation6], 8192
    $region21: #{tpu_custom_call.1} parent=1 // pred_fallthru
      _
    %v42 = vld [vmem:[#allocation2] sm:$0xff]
    %v43 = vld [vmem:[#allocation2 + $0x8] sm:$0xff]
    %v46 = vcombine.high %v42, %v42
    %v48 = vunpack.c.l.s4 1983009808
    %v49 = vunpack.c.0.s8 %v48
    %v50 = vlaneseq
    %v51 = vshrl.u32 %v50, 7
    %v52 = vsub.s32 %v49, %v51
    %v53 = vrot.slane %v42, %v52
    %v55 = vunpack.c.l.s4 1983009808
    %v56 = vunpack.c.0.s8 %v55
    %v57 = vlaneseq
    %v58 = vshrl.u32 %v57, 7
    %v59 = vsub.s32 %v56, %v58
    %v60 = vrot.slane %v46, %v59
    %v61 = vcombine.high %v53, %v53
    %v62 = vcombine.high %v60, %v60
    %v63 = vcombine.high %v43, %v43
    %v65 = vunpack.c.l.s4 1983009808
    %v66 = vunpack.c.0.s8 %v65
    %v67 = vlaneseq
    %v68 = vshrl.u32 %v67, 7
    %v69 = vsub.s32 %v66, %v68
    %v70 = vrot.slane %v43, %v69
    %v72 = vunpack.c.l.s4 1983009808
    %v73 = vunpack.c.0.s8 %v72
    %v74 = vlaneseq
    %v75 = vshrl.u32 %v74, 7
    %v76 = vsub.s32 %v73, %v75
    %v77 = vrot.slane %v63, %v76
    %v78 = vcombine.high %v70, %v70
    %v79 = vcombine.high %v77, %v77
    %v88 = vpack.c.bf16 %v53, %v53
    %v89 = vpack.c.bf16 %v61, %v61
    %v90 = vpack.c.bf16 %v60, %v60
    %v91 = vpack.c.bf16 %v62, %v62
    %v92 = vpack.c.bf16 %v70, %v70
    %v93 = vpack.c.bf16 %v78, %v78
    %v94 = vpack.c.bf16 %v77, %v77
    %v95 = vpack.c.bf16 %v79, %v79
    %v96 = vld [vmem:[#allocation5] sm:$0xf]
    %v97 = vld [vmem:[#allocation5 + $0x4] sm:$0xf]
    %v98 = vld [vmem:[#allocation5 + $0x8] sm:$0xf]
    %v99 = vld [vmem:[#allocation5 + $0xc] sm:$0xf]
    %v100 = vld [vmem:[#allocation5 + $0x10] sm:$0xf]
    %v101 = vld [vmem:[#allocation5 + $0x14] sm:$0xf]
    %v102 = vld [vmem:[#allocation5 + $0x18] sm:$0xf]
    %v103 = vld [vmem:[#allocation5 + $0x1c] sm:$0xf]
    %v104 = vld [vmem:[#allocation5 + $0x20] sm:$0xf]
    %v105 = vld [vmem:[#allocation5 + $0x24] sm:$0xf]
    %v106 = vld [vmem:[#allocation5 + $0x28] sm:$0xf]
    %v107 = vld [vmem:[#allocation5 + $0x2c] sm:$0xf]
    %v108 = vld [vmem:[#allocation5 + $0x30] sm:$0xf]
    %v109 = vld [vmem:[#allocation5 + $0x34] sm:$0xf]
    %v110 = vld [vmem:[#allocation5 + $0x38] sm:$0xf]
    %v111 = vld [vmem:[#allocation5 + $0x3c] sm:$0xf]
    %v112 = vld [vmem:[#allocation5 + $0x40] sm:$0xf]
    %v113 = vld [vmem:[#allocation5 + $0x44] sm:$0xf]
    %v114 = vld [vmem:[#allocation5 + $0x48] sm:$0xf]
    %v115 = vld [vmem:[#allocation5 + $0x4c] sm:$0xf]
    %v116 = vld [vmem:[#allocation5 + $0x50] sm:$0xf]
    %v117 = vld [vmem:[#allocation5 + $0x54] sm:$0xf]
    %v118 = vld [vmem:[#allocation5 + $0x58] sm:$0xf]
    %v119 = vld [vmem:[#allocation5 + $0x5c] sm:$0xf]
    %v120 = vld [vmem:[#allocation5 + $0x60] sm:$0xf]
    %v121 = vld [vmem:[#allocation5 + $0x64] sm:$0xf]
    %v122 = vld [vmem:[#allocation5 + $0x68] sm:$0xf]
    %v123 = vld [vmem:[#allocation5 + $0x6c] sm:$0xf]
    %v124 = vld [vmem:[#allocation5 + $0x70] sm:$0xf]
    %v125 = vld [vmem:[#allocation5 + $0x74] sm:$0xf]
    %v126 = vld [vmem:[#allocation5 + $0x78] sm:$0xf]
    %v127 = vld [vmem:[#allocation5 + $0x7c] sm:$0xf]
    %v128 = vld [vmem:[#allocation5 + $0x80] sm:$0xf]
    %v129 = vld [vmem:[#allocation5 + $0x84] sm:$0xf]
    %v130 = vld [vmem:[#allocation5 + $0x88] sm:$0xf]
    %v131 = vld [vmem:[#allocation5 + $0x8c] sm:$0xf]
    %v132 = vld [vmem:[#allocation5 + $0x90] sm:$0xf]
    %v133 = vld [vmem:[#allocation5 + $0x94] sm:$0xf]
    %v134 = vld [vmem:[#allocation5 + $0x98] sm:$0xf]
    %v135 = vld [vmem:[#allocation5 + $0x9c] sm:$0xf]
    %v136 = vld [vmem:[#allocation5 + $0xa0] sm:$0xf]
    %v137 = vld [vmem:[#allocation5 + $0xa4] sm:$0xf]
    %v138 = vld [vmem:[#allocation5 + $0xa8] sm:$0xf]
    %v139 = vld [vmem:[#allocation5 + $0xac] sm:$0xf]
    %v140 = vld [vmem:[#allocation5 + $0xb0] sm:$0xf]
    %v141 = vld [vmem:[#allocation5 + $0xb4] sm:$0xf]
    %v142 = vld [vmem:[#allocation5 + $0xb8] sm:$0xf]
    %v143 = vld [vmem:[#allocation5 + $0xbc] sm:$0xf]
    %v144 = vld [vmem:[#allocation5 + $0xc0] sm:$0xf]
    %v145 = vld [vmem:[#allocation5 + $0xc4] sm:$0xf]
    %v146 = vld [vmem:[#allocation5 + $0xc8] sm:$0xf]
    %v147 = vld [vmem:[#allocation5 + $0xcc] sm:$0xf]
    %v148 = vld [vmem:[#allocation5 + $0xd0] sm:$0xf]
    %v149 = vld [vmem:[#allocation5 + $0xd4] sm:$0xf]
    %v150 = vld [vmem:[#allocation5 + $0xd8] sm:$0xf]
    %v151 = vld [vmem:[#allocation5 + $0xdc] sm:$0xf]
    %v152 = vld [vmem:[#allocation5 + $0xe0] sm:$0xf]
    %v153 = vld [vmem:[#allocation5 + $0xe4] sm:$0xf]
    %v154 = vld [vmem:[#allocation5 + $0xe8] sm:$0xf]
    %v155 = vld [vmem:[#allocation5 + $0xec] sm:$0xf]
    %v156 = vld [vmem:[#allocation5 + $0xf0] sm:$0xf]
    %v157 = vld [vmem:[#allocation5 + $0xf4] sm:$0xf]
    %v158 = vld [vmem:[#allocation5 + $0xf8] sm:$0xf]
    %v159 = vld [vmem:[#allocation5 + $0xfc] sm:$0xf]
    %v160 = vld [vmem:[#allocation5 + $0x100] sm:$0xf]
    %v161 = vld [vmem:[#allocation5 + $0x104] sm:$0xf]
    %v162 = vld [vmem:[#allocation5 + $0x108] sm:$0xf]
    %v163 = vld [vmem:[#allocation5 + $0x10c] sm:$0xf]
    %v164 = vld [vmem:[#allocation5 + $0x110] sm:$0xf]
    %v165 = vld [vmem:[#allocation5 + $0x114] sm:$0xf]
    %v166 = vld [vmem:[#allocation5 + $0x118] sm:$0xf]
    %v167 = vld [vmem:[#allocation5 + $0x11c] sm:$0xf]
    %v168 = vld [vmem:[#allocation5 + $0x120] sm:$0xf]
    %v169 = vld [vmem:[#allocation5 + $0x124] sm:$0xf]
    %v170 = vld [vmem:[#allocation5 + $0x128] sm:$0xf]
    %v171 = vld [vmem:[#allocation5 + $0x12c] sm:$0xf]
    %v172 = vld [vmem:[#allocation5 + $0x130] sm:$0xf]
    %v173 = vld [vmem:[#allocation5 + $0x134] sm:$0xf]
    %v174 = vld [vmem:[#allocation5 + $0x138] sm:$0xf]
    %v175 = vld [vmem:[#allocation5 + $0x13c] sm:$0xf]
    %v176 = vld [vmem:[#allocation5 + $0x140] sm:$0xf]
    %v177 = vld [vmem:[#allocation5 + $0x144] sm:$0xf]
    %v178 = vld [vmem:[#allocation5 + $0x148] sm:$0xf]
    %v179 = vld [vmem:[#allocation5 + $0x14c] sm:$0xf]
    %v180 = vld [vmem:[#allocation5 + $0x150] sm:$0xf]
    %v181 = vld [vmem:[#allocation5 + $0x154] sm:$0xf]
    %v182 = vld [vmem:[#allocation5 + $0x158] sm:$0xf]
    %v183 = vld [vmem:[#allocation5 + $0x15c] sm:$0xf]
    %v184 = vld [vmem:[#allocation5 + $0x160] sm:$0xf]
    %v185 = vld [vmem:[#allocation5 + $0x164] sm:$0xf]
    %v186 = vld [vmem:[#allocation5 + $0x168] sm:$0xf]
    %v187 = vld [vmem:[#allocation5 + $0x16c] sm:$0xf]
    %v188 = vld [vmem:[#allocation5 + $0x170] sm:$0xf]
    %v189 = vld [vmem:[#allocation5 + $0x174] sm:$0xf]
    %v190 = vld [vmem:[#allocation5 + $0x178] sm:$0xf]
    %v191 = vld [vmem:[#allocation5 + $0x17c] sm:$0xf]
    %v192 = vld [vmem:[#allocation5 + $0x180] sm:$0xf]
    %v193 = vld [vmem:[#allocation5 + $0x184] sm:$0xf]
    %v194 = vld [vmem:[#allocation5 + $0x188] sm:$0xf]
    %v195 = vld [vmem:[#allocation5 + $0x18c] sm:$0xf]
    %v196 = vld [vmem:[#allocation5 + $0x190] sm:$0xf]
    %v197 = vld [vmem:[#allocation5 + $0x194] sm:$0xf]
    %v198 = vld [vmem:[#allocation5 + $0x198] sm:$0xf]
    %v199 = vld [vmem:[#allocation5 + $0x19c] sm:$0xf]
    %v200 = vld [vmem:[#allocation5 + $0x1a0] sm:$0xf]
    %v201 = vld [vmem:[#allocation5 + $0x1a4] sm:$0xf]
    %v202 = vld [vmem:[#allocation5 + $0x1a8] sm:$0xf]
    %v203 = vld [vmem:[#allocation5 + $0x1ac] sm:$0xf]
    %v204 = vld [vmem:[#allocation5 + $0x1b0] sm:$0xf]
    %v205 = vld [vmem:[#allocation5 + $0x1b4] sm:$0xf]
    %v206 = vld [vmem:[#allocation5 + $0x1b8] sm:$0xf]
    %v207 = vld [vmem:[#allocation5 + $0x1bc] sm:$0xf]
    %v208 = vld [vmem:[#allocation5 + $0x1c0] sm:$0xf]
    %v209 = vld [vmem:[#allocation5 + $0x1c4] sm:$0xf]
    %v210 = vld [vmem:[#allocation5 + $0x1c8] sm:$0xf]
    %v211 = vld [vmem:[#allocation5 + $0x1cc] sm:$0xf]
    %v212 = vld [vmem:[#allocation5 + $0x1d0] sm:$0xf]
    %v213 = vld [vmem:[#allocation5 + $0x1d4] sm:$0xf]
    %v214 = vld [vmem:[#allocation5 + $0x1d8] sm:$0xf]
    %v215 = vld [vmem:[#allocation5 + $0x1dc] sm:$0xf]
    %v216 = vld [vmem:[#allocation5 + $0x1e0] sm:$0xf]
    %v217 = vld [vmem:[#allocation5 + $0x1e4] sm:$0xf]
    %v218 = vld [vmem:[#allocation5 + $0x1e8] sm:$0xf]
    %v219 = vld [vmem:[#allocation5 + $0x1ec] sm:$0xf]
    %v220 = vld [vmem:[#allocation5 + $0x1f0] sm:$0xf]
    %v221 = vld [vmem:[#allocation5 + $0x1f4] sm:$0xf]
    %v222 = vld [vmem:[#allocation5 + $0x1f8] sm:$0xf]
    %v223 = vld [vmem:[#allocation5 + $0x1fc] sm:$0xf]
    %v352 = vunpack.c.l.b16 %v96
    %v353 = vunpack.c.l.b16 %v97
    %v354 = vunpack.c.l.b16 %v98
    %v355 = vunpack.c.l.b16 %v99
    %v356 = vunpack.c.l.b16 %v100
    %v357 = vunpack.c.l.b16 %v101
    %v358 = vunpack.c.l.b16 %v102
    %v359 = vunpack.c.l.b16 %v103
    %v360 = vunpack.c.l.b16 %v104
    %v361 = vunpack.c.l.b16 %v105
    %v362 = vunpack.c.l.b16 %v106
    %v363 = vunpack.c.l.b16 %v107
    %v364 = vunpack.c.l.b16 %v108
    %v365 = vunpack.c.l.b16 %v109
    %v366 = vunpack.c.l.b16 %v110
    %v367 = vunpack.c.l.b16 %v111
    %v368 = vunpack.c.l.b16 %v112
    %v369 = vunpack.c.l.b16 %v113
    %v370 = vunpack.c.l.b16 %v114
    %v371 = vunpack.c.l.b16 %v115
    %v372 = vunpack.c.l.b16 %v116
    %v373 = vunpack.c.l.b16 %v117
    %v374 = vunpack.c.l.b16 %v118
    %v375 = vunpack.c.l.b16 %v119
    %v376 = vunpack.c.l.b16 %v120
    %v377 = vunpack.c.l.b16 %v121
    %v378 = vunpack.c.l.b16 %v122
    %v379 = vunpack.c.l.b16 %v123
    %v380 = vunpack.c.l.b16 %v124
    %v381 = vunpack.c.l.b16 %v125
    %v382 = vunpack.c.l.b16 %v126
    %v383 = vunpack.c.l.b16 %v127
    %v384 = vunpack.c.l.b16 %v128
    %v385 = vunpack.c.l.b16 %v129
    %v386 = vunpack.c.l.b16 %v130
    %v387 = vunpack.c.l.b16 %v131
    %v388 = vunpack.c.l.b16 %v132
    %v389 = vunpack.c.l.b16 %v133
    %v390 = vunpack.c.l.b16 %v134
    %v391 = vunpack.c.l.b16 %v135
    %v392 = vunpack.c.l.b16 %v136
    %v393 = vunpack.c.l.b16 %v137
    %v394 = vunpack.c.l.b16 %v138
    %v395 = vunpack.c.l.b16 %v139
    %v396 = vunpack.c.l.b16 %v140
    %v397 = vunpack.c.l.b16 %v141
    %v398 = vunpack.c.l.b16 %v142
    %v399 = vunpack.c.l.b16 %v143
    %v400 = vunpack.c.l.b16 %v144
    %v401 = vunpack.c.l.b16 %v145
    %v402 = vunpack.c.l.b16 %v146
    %v403 = vunpack.c.l.b16 %v147
    %v404 = vunpack.c.l.b16 %v148
    %v405 = vunpack.c.l.b16 %v149
    %v406 = vunpack.c.l.b16 %v150
    %v407 = vunpack.c.l.b16 %v151
    %v408 = vunpack.c.l.b16 %v152
    %v409 = vunpack.c.l.b16 %v153
    %v410 = vunpack.c.l.b16 %v154
    %v411 = vunpack.c.l.b16 %v155
    %v412 = vunpack.c.l.b16 %v156
    %v413 = vunpack.c.l.b16 %v157
    %v414 = vunpack.c.l.b16 %v158
    %v415 = vunpack.c.l.b16 %v159
    %v416 = vunpack.c.l.b16 %v160
    %v417 = vunpack.c.l.b16 %v161
    %v418 = vunpack.c.l.b16 %v162
    %v419 = vunpack.c.l.b16 %v163
    %v420 = vunpack.c.l.b16 %v164
    %v421 = vunpack.c.l.b16 %v165
    %v422 = vunpack.c.l.b16 %v166
    %v423 = vunpack.c.l.b16 %v167
    %v424 = vunpack.c.l.b16 %v168
    %v425 = vunpack.c.l.b16 %v169
    %v426 = vunpack.c.l.b16 %v170
    %v427 = vunpack.c.l.b16 %v171
    %v428 = vunpack.c.l.b16 %v172
    %v429 = vunpack.c.l.b16 %v173
    %v430 = vunpack.c.l.b16 %v174
    %v431 = vunpack.c.l.b16 %v175
    %v432 = vunpack.c.l.b16 %v176
    %v433 = vunpack.c.l.b16 %v177
    %v434 = vunpack.c.l.b16 %v178
    %v435 = vunpack.c.l.b16 %v179
    %v436 = vunpack.c.l.b16 %v180
    %v437 = vunpack.c.l.b16 %v181
    %v438 = vunpack.c.l.b16 %v182
    %v439 = vunpack.c.l.b16 %v183
    %v440 = vunpack.c.l.b16 %v184
    %v441 = vunpack.c.l.b16 %v185
    %v442 = vunpack.c.l.b16 %v186
    %v443 = vunpack.c.l.b16 %v187
    %v444 = vunpack.c.l.b16 %v188
    %v445 = vunpack.c.l.b16 %v189
    %v446 = vunpack.c.l.b16 %v190
    %v447 = vunpack.c.l.b16 %v191
    %v448 = vunpack.c.l.b16 %v192
    %v449 = vunpack.c.l.b16 %v193
    %v450 = vunpack.c.l.b16 %v194
    %v451 = vunpack.c.l.b16 %v195
    %v452 = vunpack.c.l.b16 %v196
    %v453 = vunpack.c.l.b16 %v197
    %v454 = vunpack.c.l.b16 %v198
    %v455 = vunpack.c.l.b16 %v199
    %v456 = vunpack.c.l.b16 %v200
    %v457 = vunpack.c.l.b16 %v201
    %v458 = vunpack.c.l.b16 %v202
    %v459 = vunpack.c.l.b16 %v203
    %v460 = vunpack.c.l.b16 %v204
    %v461 = vunpack.c.l.b16 %v205
    %v462 = vunpack.c.l.b16 %v206
    %v463 = vunpack.c.l.b16 %v207
    %v464 = vunpack.c.l.b16 %v208
    %v465 = vunpack.c.l.b16 %v209
    %v466 = vunpack.c.l.b16 %v210
    %v467 = vunpack.c.l.b16 %v211
    %v468 = vunpack.c.l.b16 %v212
    %v469 = vunpack.c.l.b16 %v213
    %v470 = vunpack.c.l.b16 %v214
    %v471 = vunpack.c.l.b16 %v215
    %v472 = vunpack.c.l.b16 %v216
    %v473 = vunpack.c.l.b16 %v217
    %v474 = vunpack.c.l.b16 %v218
    %v475 = vunpack.c.l.b16 %v219
    %v476 = vunpack.c.l.b16 %v220
    %v477 = vunpack.c.l.b16 %v221
    %v478 = vunpack.c.l.b16 %v222
    %v479 = vunpack.c.l.b16 %v223
    %v480 = vpack.c.b16 %v353, %v352
    %v481 = vpack.c.b16 %v355, %v354
    %v482 = vpack.c.b16 %v357, %v356
    %v483 = vpack.c.b16 %v359, %v358
    %v484 = vpack.c.b16 %v361, %v360
    %v485 = vpack.c.b16 %v363, %v362
    %v486 = vpack.c.b16 %v365, %v364
    %v487 = vpack.c.b16 %v367, %v366
    %v488 = vpack.c.b16 %v369, %v368
    %v489 = vpack.c.b16 %v371, %v370
    %v490 = vpack.c.b16 %v373, %v372
    %v491 = vpack.c.b16 %v375, %v374
    %v492 = vpack.c.b16 %v377, %v376
    %v493 = vpack.c.b16 %v379, %v378
    %v494 = vpack.c.b16 %v381, %v380
    %v495 = vpack.c.b16 %v383, %v382
    %v496 = vpack.c.b16 %v385, %v384
    %v497 = vpack.c.b16 %v387, %v386
    %v498 = vpack.c.b16 %v389, %v388
    %v499 = vpack.c.b16 %v391, %v390
    %v500 = vpack.c.b16 %v393, %v392
    %v501 = vpack.c.b16 %v395, %v394
    %v502 = vpack.c.b16 %v397, %v396
    %v503 = vpack.c.b16 %v399, %v398
    %v504 = vpack.c.b16 %v401, %v400
    %v505 = vpack.c.b16 %v403, %v402
    %v506 = vpack.c.b16 %v405, %v404
    %v507 = vpack.c.b16 %v407, %v406
    %v508 = vpack.c.b16 %v409, %v408
    %v509 = vpack.c.b16 %v411, %v410
    %v510 = vpack.c.b16 %v413, %v412
    %v511 = vpack.c.b16 %v415, %v414
    %v512 = vpack.c.b16 %v417, %v416
    %v513 = vpack.c.b16 %v419, %v418
    %v514 = vpack.c.b16 %v421, %v420
    %v515 = vpack.c.b16 %v423, %v422
    %v516 = vpack.c.b16 %v425, %v424
    %v517 = vpack.c.b16 %v427, %v426
    %v518 = vpack.c.b16 %v429, %v428
    %v519 = vpack.c.b16 %v431, %v430
    %v520 = vpack.c.b16 %v433, %v432
    %v521 = vpack.c.b16 %v435, %v434
    %v522 = vpack.c.b16 %v437, %v436
    %v523 = vpack.c.b16 %v439, %v438
    %v524 = vpack.c.b16 %v441, %v440
    %v525 = vpack.c.b16 %v443, %v442
    %v526 = vpack.c.b16 %v445, %v444
    %v527 = vpack.c.b16 %v447, %v446
    %v528 = vpack.c.b16 %v449, %v448
    %v529 = vpack.c.b16 %v451, %v450
    %v530 = vpack.c.b16 %v453, %v452
    %v531 = vpack.c.b16 %v455, %v454
    %v532 = vpack.c.b16 %v457, %v456
    %v533 = vpack.c.b16 %v459, %v458
    %v534 = vpack.c.b16 %v461, %v460
    %v535 = vpack.c.b16 %v463, %v462
    %v536 = vpack.c.b16 %v465, %v464
    %v537 = vpack.c.b16 %v467, %v466
    %v538 = vpack.c.b16 %v469, %v468
    %v539 = vpack.c.b16 %v471, %v470
    %v540 = vpack.c.b16 %v473, %v472
    %v541 = vpack.c.b16 %v475, %v474
    %v542 = vpack.c.b16 %v477, %v476
    %v543 = vpack.c.b16 %v479, %v478
    %608 = vmatprep.subr.bf16.mxu0 0
    %609 = vmatpush1.bf16.msra.mxu0 %v480
    %610 = vmatprep.subr.bf16.mxu0 0
    %611 = vmatpush1.bf16.msra.mxu0 %v481
    %612 = vmatprep.subr.bf16.mxu0 0
    %613 = vmatpush1.bf16.msra.mxu0 %v482
    %614 = vmatprep.subr.bf16.mxu0 0
    %615 = vmatpush1.bf16.msra.mxu0 %v483
    %616 = vmatprep.subr.bf16.mxu0 0
    %617 = vmatpush1.bf16.msra.mxu0 %v484
    %618 = vmatprep.subr.bf16.mxu0 0
    %619 = vmatpush1.bf16.msra.mxu0 %v485
    %620 = vmatprep.subr.bf16.mxu0 0
    %621 = vmatpush1.bf16.msra.mxu0 %v486
    %622 = vmatprep.subr.bf16.mxu0 0
    %623 = vmatpush1.bf16.msra.mxu0 %v487
    %624 = vmatprep.subr.bf16.mxu0 0
    %625 = vmatpush1.bf16.msra.mxu0 %v488
    %626 = vmatprep.subr.bf16.mxu0 0
    %627 = vmatpush1.bf16.msra.mxu0 %v489
    %628 = vmatprep.subr.bf16.mxu0 0
    %629 = vmatpush1.bf16.msra.mxu0 %v490
    %630 = vmatprep.subr.bf16.mxu0 0
    %631 = vmatpush1.bf16.msra.mxu0 %v491
    %632 = vmatprep.subr.bf16.mxu0 0
    %633 = vmatpush1.bf16.msra.mxu0 %v492
    %634 = vmatprep.subr.bf16.mxu0 0
    %635 = vmatpush1.bf16.msra.mxu0 %v493
    %636 = vmatprep.subr.bf16.mxu0 0
    %637 = vmatpush1.bf16.msra.mxu0 %v494
    %638 = vmatprep.subr.bf16.mxu0 0
    %639 = vmatpush1.bf16.msra.mxu0 %v495
    %640 = vmatprep.mubr.bf16.mxu0 %v89
    %641 = vmatmul.mubr.bf16.gmra.mrb[0].mxu0 %v88
    %v642 = vpop.f32.mrb[0].mxu0
    %v643 = vadd.f32 0.0, %v642
    %v644 = vpop.f32.mrb[0].mxu0
    %v645 = vpop.f32.mrb[0].mxu0
    %v646 = vpop.f32.mrb[0].mxu0
    %647 = vdwg.mxu0
    %648 = vmatprep.subr.bf16.mxu0 0
    %649 = vmatpush1.bf16.msra.mxu0 %v496
    %650 = vmatprep.subr.bf16.mxu0 0
    %651 = vmatpush1.bf16.msra.mxu0 %v497
    %652 = vmatprep.subr.bf16.mxu0 0
    %653 = vmatpush1.bf16.msra.mxu0 %v498
    %654 = vmatprep.subr.bf16.mxu0 0
    %655 = vmatpush1.bf16.msra.mxu0 %v499
    %656 = vmatprep.subr.bf16.mxu0 0
    %657 = vmatpush1.bf16.msra.mxu0 %v500
    %658 = vmatprep.subr.bf16.mxu0 0
    %659 = vmatpush1.bf16.msra.mxu0 %v501
    %660 = vmatprep.subr.bf16.mxu0 0
    %661 = vmatpush1.bf16.msra.mxu0 %v502
    %662 = vmatprep.subr.bf16.mxu0 0
    %663 = vmatpush1.bf16.msra.mxu0 %v503
    %664 = vmatprep.subr.bf16.mxu0 0
    %665 = vmatpush1.bf16.msra.mxu0 %v504
    %666 = vmatprep.subr.bf16.mxu0 0
    %667 = vmatpush1.bf16.msra.mxu0 %v505
    %668 = vmatprep.subr.bf16.mxu0 0
    %669 = vmatpush1.bf16.msra.mxu0 %v506
    %670 = vmatprep.subr.bf16.mxu0 0
    %671 = vmatpush1.bf16.msra.mxu0 %v507
    %672 = vmatprep.subr.bf16.mxu0 0
    %673 = vmatpush1.bf16.msra.mxu0 %v508
    %674 = vmatprep.subr.bf16.mxu0 0
    %675 = vmatpush1.bf16.msra.mxu0 %v509
    %676 = vmatprep.subr.bf16.mxu0 0
    %677 = vmatpush1.bf16.msra.mxu0 %v510
    %678 = vmatprep.subr.bf16.mxu0 0
    %679 = vmatpush1.bf16.msra.mxu0 %v511
    %680 = vmatprep.mubr.bf16.mxu0 %v91
    %681 = vmatmul.mubr.bf16.gmra.mrb[0].mxu0 %v90
    %v682 = vpop.f32.mrb[0].mxu0
    %v683 = vadd.f32 %v643, %v682
    %v684 = vpop.f32.mrb[0].mxu0
    %v685 = vpop.f32.mrb[0].mxu0
    %v686 = vpop.f32.mrb[0].mxu0
    %687 = vdwg.mxu0
    %688 = vmatprep.subr.bf16.mxu0 0
    %689 = vmatpush1.bf16.msra.mxu0 %v512
    %690 = vmatprep.subr.bf16.mxu0 0
    %691 = vmatpush1.bf16.msra.mxu0 %v513
    %692 = vmatprep.subr.bf16.mxu0 0
    %693 = vmatpush1.bf16.msra.mxu0 %v514
    %694 = vmatprep.subr.bf16.mxu0 0
    %695 = vmatpush1.bf16.msra.mxu0 %v515
    %696 = vmatprep.subr.bf16.mxu0 0
    %697 = vmatpush1.bf16.msra.mxu0 %v516
    %698 = vmatprep.subr.bf16.mxu0 0
    %699 = vmatpush1.bf16.msra.mxu0 %v517
    %700 = vmatprep.subr.bf16.mxu0 0
    %701 = vmatpush1.bf16.msra.mxu0 %v518
    %702 = vmatprep.subr.bf16.mxu0 0
    %703 = vmatpush1.bf16.msra.mxu0 %v519
    %704 = vmatprep.subr.bf16.mxu0 0
    %705 = vmatpush1.bf16.msra.mxu0 %v520
    %706 = vmatprep.subr.bf16.mxu0 0
    %707 = vmatpush1.bf16.msra.mxu0 %v521
    %708 = vmatprep.subr.bf16.mxu0 0
    %709 = vmatpush1.bf16.msra.mxu0 %v522
    %710 = vmatprep.subr.bf16.mxu0 0
    %711 = vmatpush1.bf16.msra.mxu0 %v523
    %712 = vmatprep.subr.bf16.mxu0 0
    %713 = vmatpush1.bf16.msra.mxu0 %v524
    %714 = vmatprep.subr.bf16.mxu0 0
    %715 = vmatpush1.bf16.msra.mxu0 %v525
    %716 = vmatprep.subr.bf16.mxu0 0
    %717 = vmatpush1.bf16.msra.mxu0 %v526
    %718 = vmatprep.subr.bf16.mxu0 0
    %719 = vmatpush1.bf16.msra.mxu0 %v527
    %720 = vmatprep.mubr.bf16.mxu0 %v93
    %721 = vmatmul.mubr.bf16.gmra.mrb[0].mxu0 %v92
    %v722 = vpop.f32.mrb[0].mxu0
    %v723 = vadd.f32 %v683, %v722
    %v724 = vpop.f32.mrb[0].mxu0
    %v725 = vpop.f32.mrb[0].mxu0
    %v726 = vpop.f32.mrb[0].mxu0
    %727 = vdwg.mxu0
    %728 = vmatprep.subr.bf16.mxu0 0
    %729 = vmatpush1.bf16.msra.mxu0 %v528
    %730 = vmatprep.subr.bf16.mxu0 0
    %731 = vmatpush1.bf16.msra.mxu0 %v529
    %732 = vmatprep.subr.bf16.mxu0 0
    %733 = vmatpush1.bf16.msra.mxu0 %v530
    %734 = vmatprep.subr.bf16.mxu0 0
    %735 = vmatpush1.bf16.msra.mxu0 %v531
    %736 = vmatprep.subr.bf16.mxu0 0
    %737 = vmatpush1.bf16.msra.mxu0 %v532
    %738 = vmatprep.subr.bf16.mxu0 0
    %739 = vmatpush1.bf16.msra.mxu0 %v533
    %740 = vmatprep.subr.bf16.mxu0 0
    %741 = vmatpush1.bf16.msra.mxu0 %v534
    %742 = vmatprep.subr.bf16.mxu0 0
    %743 = vmatpush1.bf16.msra.mxu0 %v535
    %744 = vmatprep.subr.bf16.mxu0 0
    %745 = vmatpush1.bf16.msra.mxu0 %v536
    %746 = vmatprep.subr.bf16.mxu0 0
    %747 = vmatpush1.bf16.msra.mxu0 %v537
    %748 = vmatprep.subr.bf16.mxu0 0
    %749 = vmatpush1.bf16.msra.mxu0 %v538
    %750 = vmatprep.subr.bf16.mxu0 0
    %751 = vmatpush1.bf16.msra.mxu0 %v539
    %752 = vmatprep.subr.bf16.mxu0 0
    %753 = vmatpush1.bf16.msra.mxu0 %v540
    %754 = vmatprep.subr.bf16.mxu0 0
    %755 = vmatpush1.bf16.msra.mxu0 %v541
    %756 = vmatprep.subr.bf16.mxu0 0
    %757 = vmatpush1.bf16.msra.mxu0 %v542
    %758 = vmatprep.subr.bf16.mxu0 0
    %759 = vmatpush1.bf16.msra.mxu0 %v543
    %760 = vmatprep.mubr.bf16.mxu0 %v95
    %761 = vmatmul.mubr.bf16.gmra.mrb[0].mxu0 %v94
    %v762 = vpop.f32.mrb[0].mxu0
    %v763 = vadd.f32 %v723, %v762
    %v764 = vpop.f32.mrb[0].mxu0
    %v765 = vpop.f32.mrb[0].mxu0
    %v766 = vpop.f32.mrb[0].mxu0
    %767 = vdwg.mxu0
    %p768 = scmp.eq.s32.totalorder 0, 0
    // Predicated region
    $region22: #{tpu_custom_call.1} parent=1 // pred_check
      %p769 = pneg %p768
    $region23: #{tpu_custom_call.1} parent=1 // pred_check_branch
      %771 = sbr.rel (%p769) target = $region25
    $region24: #{tpu_custom_call.1} parent=1 // pred_region
      %772 = vst [vmem:[#allocation7] sm:$0x3] %v763
    $region25: #{tpu_custom_call.1} parent=1 // pred_fallthru
      _
    %p773 = scmp.gt.s32.totalorder 0, 0
    // Predicated region
    $region26: #{tpu_custom_call.1} parent=1 // pred_check
      %p774 = pneg %p773
    $region27: #{tpu_custom_call.1} parent=1 // pred_check_branch
      %776 = sbr.rel (%p774) target = $region29
    $region28: #{tpu_custom_call.1} parent=1 // pred_region
      %v777 = vld [vmem:[#allocation7] sm:$0x3]
      %v778 = vadd.f32 %v777, %v763
      %779 = vst [vmem:[#allocation7] sm:$0x3] %v778
    $region29: #{tpu_custom_call.1} parent=1 // pred_fallthru
      _
    // Predicated region
    $region30: #{tpu_custom_call.1} parent=1 // pred_check
      %p780 = pneg %p768
    $region31: #{tpu_custom_call.1} parent=1 // pred_check_branch
      %782 = sbr.rel (%p780) target = $region33
    $region32: #{tpu_custom_call.1} parent=1 // pred_region
      %v783 = vld [vmem:[#allocation7] sm:$0x3]
      %v784 = vld [vmem:[%s2] sm:$0x1]
      %v786 = vlaneseq
      %v787 = vshrl.u32 %v786, 7
      %v788 = vsub.s32 0, %v787
      %v789 = vrot.slane %v784, %v788
      %v791 = vadd.f32 %v783, %v789
      %vm792 = vcmask 1041408
      %v793 = vsel %vm792, %v791, -inf
      %794 = vmax.xlane.f32.xlu0 %v793
      %v795 = vpop.xlane.xlu0 %794
      %v796 = vsub.f32 %v791, %v795
      %v797 = vmul.f32 %v796, 1.442695
      %v798 = vpow.pop %v797
      %v799 = vsel %vm792, %v798, 0.0
      %800 = vadd.xlane.f32.xlu0 %v799
      %v801 = vpop.xlane.xlu0 %800
      %v802 = vrcp.pop %v801
      %v803 = vmul.f32 %v798, %v802
      %804 = vst [vmem:[#allocation7] sm:$0x3] %v803
    $region33: #{tpu_custom_call.1} parent=1 // pred_fallthru
      _
    // Predicated region
    $region34: #{tpu_custom_call.1} parent=1 // pred_check
      _
    $region35: #{tpu_custom_call.1} parent=1 // pred_check_branch
      %806 = sbr.rel (0) target = $region37
    $region36: #{tpu_custom_call.1} parent=1 // pred_region
      %s808 = ssub.s32 32, 32
      %809 = vsyncadd [#allocation4], %s808
      %s811 = sshll.u32 [#allocation7], 4
      %s812 = int_to_ptr.vmem [resolvable:$true] %s811
      %814 = dma.vmem_to_hbm [thread:$0]  %s812, 32, %s3, [#allocation4]
    $region37: #{tpu_custom_call.1} parent=1 // pred_fallthru
      _
    // Predicated region
    $region38: #{tpu_custom_call.1} parent=1 // pred_check
      _
    $region39: #{tpu_custom_call.1} parent=1 // pred_check_branch
      %816 = sbr.rel (0) target = $region41
    $region40: #{tpu_custom_call.1} parent=1 // pred_region
      %817 = dma.done [#allocation4], 32
    $region41: #{tpu_custom_call.1} parent=1 // pred_fallthru
      _
    %818 = vsyncpa [#allocation3], 1
    %819 = vsyncpa [#allocation6], 1
    %820 = vsyncpa [#allocation4], 1

</llo_original>
